<compile_context>
chip_gen: v7x
topology: tpu7x:2x2x1
jax: 0.10.0
libtpu: 0.0.40
codegen_flags: <defaults>
</compile_context>

<pallas_src>
import math

import jax
import jax.numpy as jnp
from jax.experimental import pallas as pl
from jax.experimental.pallas import tpu as pltpu


def _select_first_two_kernel(x_ref, o_ref):
    # x_ref: (TR, W) row tile; o_ref: (2, TR) lane-dense output tile.
    # Columns 0 and 1 are gathered and transposed onto the lane axis.
    o_ref[...] = x_ref[:, 0:2].T


def _pick_row_tile(n_rows, w, itemsize):
    """Rows per grid step.

    Constraints: input block is (TR, W)  -> TR % 8 == 0 (sublane axis),
                 output block is (2, TR) -> TR % 128 == 0 (lane axis),
    unless TR == n_rows (full extent).  Cap the per-buffer input tile at ~4 MiB so
    double-buffered in/out tiles stay well inside v7x's 64 MiB VMEM.
    """
    tile_bytes = 4 * 1024 * 1024
    rows_by_bytes = (tile_bytes // max(1, w * itemsize)) // 128 * 128
    max_rows = max(128, min(2048, rows_by_bytes))
    if n_rows <= max_rows:
        return n_rows  # single full-extent block (also covers tiny / 1-D inputs)
    return max_rows


def dummy_forward(x, *, row_tile=None):
    """Equivalent of Dummy().forward(x) == x[..., [0, 1]]."""
    *lead, w = x.shape
    if w < 2:
        raise ValueError("last dimension must be >= 2")
    n_rows = math.prod(lead) if lead else 1

    tr = row_tile if row_tile is not None else _pick_row_tile(
        n_rows, w, x.dtype.itemsize)
    grid = (pl.cdiv(n_rows, tr),)

    x2d = x.reshape(n_rows, w)

    out_2r = pl.pallas_call(
        _select_first_two_kernel,
        out_shape=jax.ShapeDtypeStruct((2, n_rows), x.dtype),
        grid=grid,
        in_specs=[pl.BlockSpec((tr, w), lambda i: (i, 0))],
        out_specs=pl.BlockSpec((2, tr), lambda i: (0, i)),
        compiler_params=pltpu.CompilerParams(
            dimension_semantics=("parallel",),
            vmem_limit_bytes=32 * 1024 * 1024,
        ),
    )(x2d)

    # Small, output-only transpose back to the natural (..., 2) layout.
    return out_2r.T.reshape(*lead, 2)


if __name__ == "__main__":
    key = jax.random.PRNGKey(0)

    # Small NCHW-style input consistent with a generic forward(X).
    x = jax.random.normal(key, (2, 4, 16, 16), dtype=jnp.float32)
    y = jax.block_until_ready(dummy_forward(x))
    ref = x[..., jnp.array([0, 1])]
    assert y.shape == (2, 4, 16, 2), y.shape
    assert y.dtype == x.dtype
    assert bool(jnp.array_equal(y, ref)), "mismatch vs reference (single-block path)"

    # Exercise the multi-block grid path, including a partial trailing block:
    # R = 2*4*48 = 384 rows, row_tile = 256 -> grid = (2,), last block partial.
    x2 = jax.random.normal(jax.random.PRNGKey(1), (2, 4, 48, 16), dtype=jnp.float32)
    y2 = jax.block_until_ready(dummy_forward(x2, row_tile=256))
    ref2 = x2[..., jnp.array([0, 1])]
    assert y2.shape == (2, 4, 48, 2), y2.shape
    assert bool(jnp.array_equal(y2, ref2)), "mismatch vs reference (gridded path)"

    print("KERNEL_OK")
</pallas_src>

<mosaic_0001>
module attributes {stable_mosaic.version = 11 : i64} {
  func.func @_select_first_two_kernel(%arg0: i32, %arg1: memref<128x16xf32, #tpu.memory_space<vmem>>, %arg2: memref<2x128xf32, #tpu.memory_space<vmem>>) attributes {dimension_semantics = [#tpu.dimension_semantics<parallel>], iteration_bounds = array<i64: 1>, scalar_prefetch = 0 : i64, scratch_operands = 0 : i64, tpu.core_type = #tpu.core_type<tc>, window_params = [{transform_indices = @transform_0, window_bounds = array<i64: 128, 16>}, {transform_indices = @transform_1, window_bounds = array<i64: 2, 128>}]} {
    %c0 = arith.constant 0 : index
    %c0_0 = arith.constant 0 : index
    %0 = vector.load %arg1[%c0, %c0_0] : memref<128x16xf32, #tpu.memory_space<vmem>>, vector<128x2xf32>
    %1 = tpu.transpose %0, [1, 0] : vector<128x2xf32> -> vector<2x128xf32>
    %c0_1 = arith.constant 0 : index
    %c0_2 = arith.constant 0 : index
    %2 = vector.load %arg2[%c0_1, %c0_2] : memref<2x128xf32, #tpu.memory_space<vmem>>, vector<2x128xf32>
    tpu.vector_store %arg2[%c0_1, %c0_2], %1 {strides = array<i32>} : memref<2x128xf32, #tpu.memory_space<vmem>>, vector<2x128xf32>,
    return
  }
  func.func @transform_0(%arg0: i32) -> (i32, i32) {
    %c0_i32 = arith.constant 0 : i32
    %c0_i32_0 = arith.constant 0 : i32
    return %arg0, %c0_i32 : i32, i32
  }
  func.func @transform_1(%arg0: i32) -> (i32, i32) {
    %c0_i32 = arith.constant 0 : i32
    %c0_i32_0 = arith.constant 0 : i32
    return %c0_i32, %arg0 : i32, i32
  }
}

</mosaic_0001>

<llo_original>
// kernel: tpu_custom_call.1
$region0: #{tpu_custom_call.1}
  #allocation0 [shape = 'u32[]', space=smem, size = 0x4, offset = 0x4, fixed_abs, tag = 'smem constant byte address 0x4 - core index']
  #allocation1 [shape = 'u32[144,128]{1,0:T(1,128)}', space=vmem, size = 0x12000, scoped, tag = 'internal scratch']
  %s0 = inlined_call_operand.vmem [shape: f32[128,16], index: 0, kind: input, shape index: {}]
  %s1 = inlined_call_operand.hbm [shape: f32[2,128], index: 1, kind: output, shape index: {}]
  %s2 = sld [smem:[#allocation0]]
  $region14: #{tpu_custom_call.1} parent=0
    _
  %s4 = ssub.s32 1, %s2
  %s5 = scalar_select 0, %s4, %s2
  $region1: #{tpu_custom_call.1} parent=0
    #allocation2 [shape = 'u8[1024]{0}', space=vmem, size = 0x400, scoped, tag = 'output window, operand 0, single buffered']
    #allocation3 [shape = 's32[1]{0}', space=sflag, size = 0x4, scoped, tag = 'scoped memory for tpu_custom_call.1']
    %6 = vsyncpa [#allocation3], 0
    // Predicated region
    $region2: #{tpu_custom_call.1} parent=1 // pred_check
      _
    $region3: #{tpu_custom_call.1} parent=1 // pred_check_branch
      %8 = sbr.rel (0) target = $region5
    $region4: #{tpu_custom_call.1} parent=1 // pred_region
      _
    $region5: #{tpu_custom_call.1} parent=1 // pred_fallthru
      _
    %v9 = vld [vmem:[%s0] sm:$0xff]
    %v10 = vld [vmem:[%s0 + $0x8] sm:$0xff]
    %v11 = vld [vmem:[%s0 + $0x10] sm:$0xff]
    %v12 = vld [vmem:[%s0 + $0x18] sm:$0xff]
    %v13 = vld [vmem:[%s0 + $0x20] sm:$0xff]
    %v14 = vld [vmem:[%s0 + $0x28] sm:$0xff]
    %v15 = vld [vmem:[%s0 + $0x30] sm:$0xff]
    %v16 = vld [vmem:[%s0 + $0x38] sm:$0xff]
    %v17 = vld [vmem:[%s0 + $0x40] sm:$0xff]
    %v18 = vld [vmem:[%s0 + $0x48] sm:$0xff]
    %v19 = vld [vmem:[%s0 + $0x50] sm:$0xff]
    %v20 = vld [vmem:[%s0 + $0x58] sm:$0xff]
    %v21 = vld [vmem:[%s0 + $0x60] sm:$0xff]
    %v22 = vld [vmem:[%s0 + $0x68] sm:$0xff]
    %v23 = vld [vmem:[%s0 + $0x70] sm:$0xff]
    %v24 = vld [vmem:[%s0 + $0x78] sm:$0xff]
    %25 = vxpose.xlu0.b32.start [1/16] %v9, 128
    %26 = vxpose.xlu0.b32.cont [2/16] %v10, 128
    %27 = vxpose.xlu0.b32.cont [3/16] %v11, 128
    %28 = vxpose.xlu0.b32.cont [4/16] %v12, 128
    %29 = vxpose.xlu0.b32.cont [5/16] %v13, 128
    %30 = vxpose.xlu0.b32.cont [6/16] %v14, 128
    %31 = vxpose.xlu0.b32.cont [7/16] %v15, 128
    %32 = vxpose.xlu0.b32.cont [8/16] %v16, 128
    %33 = vxpose.xlu0.b32.cont [9/16] %v17, 128
    %34 = vxpose.xlu0.b32.cont [10/16] %v18, 128
    %35 = vxpose.xlu0.b32.cont [11/16] %v19, 128
    %36 = vxpose.xlu0.b32.cont [12/16] %v20, 128
    %37 = vxpose.xlu0.b32.cont [13/16] %v21, 128
    %38 = vxpose.xlu0.b32.cont [14/16] %v22, 128
    %39 = vxpose.xlu0.b32.cont [15/16] %v23, 128
    %40 = vxpose.xlu0.b32.end [16/16] %v24, 128
    %v41 = vpop.trf.xlu0
    %v42 = vpop.trf.xlu0
    %v43 = vpop.trf.xlu0
    %v44 = vpop.trf.xlu0
    %v45 = vpop.trf.xlu0
    %v46 = vpop.trf.xlu0
    %v47 = vpop.trf.xlu0
    %v48 = vpop.trf.xlu0
    %v49 = vpop.trf.xlu0
    %v50 = vpop.trf.xlu0
    %v51 = vpop.trf.xlu0
    %v52 = vpop.trf.xlu0
    %v53 = vpop.trf.xlu0
    %v54 = vpop.trf.xlu0
    %v55 = vpop.trf.xlu0
    %v56 = vpop.trf.xlu0
    %57 = vst [vmem:[#allocation2] sm:$0x3] %v41
    // Predicated region
    $region6: #{tpu_custom_call.1} parent=1 // pred_check
      _
    $region7: #{tpu_custom_call.1} parent=1 // pred_check_branch
      %59 = sbr.rel (0) target = $region9
    $region8: #{tpu_custom_call.1} parent=1 // pred_region
      %s61 = ssub.s32 32, 32
      %62 = vsyncadd [#allocation3], %s61
      %s64 = sshll.u32 [#allocation2], 4
      %s65 = int_to_ptr.vmem [resolvable:$true] %s64
      %67 = dma.vmem_to_hbm [thread:$0]  %s65, 32, %s1, [#allocation3]
    $region9: #{tpu_custom_call.1} parent=1 // pred_fallthru
      _
    // Predicated region
    $region10: #{tpu_custom_call.1} parent=1 // pred_check
      _
    $region11: #{tpu_custom_call.1} parent=1 // pred_check_branch
      %69 = sbr.rel (0) target = $region13
    $region12: #{tpu_custom_call.1} parent=1 // pred_region
      %70 = dma.done [#allocation3], 32
    $region13: #{tpu_custom_call.1} parent=1 // pred_fallthru
      _
    %71 = vsyncpa [#allocation3], 1

</llo_original>
